<compile_context>
chip_gen: v7x
topology: tpu7x:2x2x1
jax: 0.10.0
libtpu: 0.0.40
codegen_flags: <defaults>
</compile_context>

<pallas_src>
import math
import functools

import jax
import jax.numpy as jnp
from jax import lax
from jax.experimental import pallas as pl
from jax.experimental.pallas import tpu as pltpu


def _proj_kernel(x_ref, w_ref, b_ref, q_ref, k_ref, v_ref, *, d_model):
    """Folded projection: x @ W_fold + b_fold -> (q * 1/sqrt(Dh), k, v), stored in bf16."""
    x = x_ref[0].astype(jnp.bfloat16)                                      # (TP, D)
    h = jnp.dot(x, w_ref[...], preferred_element_type=jnp.float32)        # (TP, 3D) f32 acc
    h = (h + b_ref[0]).astype(jnp.bfloat16)
    q_ref[0] = h[:, 0 * d_model:1 * d_model]
    k_ref[0] = h[:, 1 * d_model:2 * d_model]
    v_ref[0] = h[:, 2 * d_model:3 * d_model]


def _flash_kernel(q_ref, k_ref, v_ref, wo_ref, bo_ref, o_ref,
                  m_s, l_s, acc_s, *, n_heads, d_head, tq, tk):
    qi = pl.program_id(1)
    ki = pl.program_id(2)
    nk = pl.num_programs(2)
    q_start = qi * tq
    k_start = ki * tk
    neg_inf = jnp.float32(-jnp.inf)

    @pl.when(ki == 0)
    def _init():
        m_s[...] = jnp.full_like(m_s, -jnp.inf)
        l_s[...] = jnp.zeros_like(l_s)
        acc_s[...] = jnp.zeros_like(acc_s)

    # Skip KV blocks lying entirely above the causal diagonal (~2x fewer score blocks).
    @pl.when(k_start <= q_start + tq - 1)
    def _compute():
        q = q_ref[0]          # (TQ, D) bf16, already scaled by 1/sqrt(d_head)
        k = k_ref[0]          # (TK, D) bf16
        v = v_ref[0]          # (TK, D) bf16
        row = q_start + lax.broadcasted_iota(jnp.int32, (tq, tk), 0)
        col = k_start + lax.broadcasted_iota(jnp.int32, (tq, tk), 1)
        masked = col > row    # only the diagonal-crossing block has any True entries
        for h in range(n_heads):
            sl = slice(h * d_head, (h + 1) * d_head)
            # q @ k^T without materializing the transpose: contract last dims on the MXU.
            s = lax.dot_general(q[:, sl], k[:, sl], (((1,), (1,)), ((), ())),
                                preferred_element_type=jnp.float32)       # (TQ, TK)
            s = jnp.where(masked, neg_inf, s)
            m_prev = m_s[h]                                               # (TQ, 1)
            m_new = jnp.maximum(m_prev, jnp.max(s, axis=-1, keepdims=True))
            alpha = jnp.exp(m_prev - m_new)
            p = jnp.exp(s - m_new)                                        # (TQ, TK) f32
            l_s[h] = alpha * l_s[h] + jnp.sum(p, axis=-1, keepdims=True)
            acc_s[:, sl] = alpha * acc_s[:, sl] + jnp.dot(
                p.astype(jnp.bfloat16), v[:, sl], preferred_element_type=jnp.float32)
            m_s[h] = m_new

    @pl.when(ki == nk - 1)
    def _finalize():
        for h in range(n_heads):
            sl = slice(h * d_head, (h + 1) * d_head)
            acc_s[:, sl] = acc_s[:, sl] * pl.reciprocal(l_s[h], approx=True)
        # Fused MHA out_proj on the normalized context.
        y = jnp.dot(acc_s[...].astype(jnp.bfloat16), wo_ref[...],
                    preferred_element_type=jnp.float32) + bo_ref[0]
        o_ref[0] = y.astype(o_ref.dtype)


def causal_self_attention(x, params, n_heads, *, block_q=256, block_kv=256, block_proj=256):
    """x: (B, L, D) float32 -> (B, L, D) float32."""
    B, L, D = x.shape
    assert D % n_heads == 0
    dh = D // n_heads
    scale = 1.0 / math.sqrt(dh)

    # ---- host-side algebraic fold of the two projections (done once at trace time) ----
    qkv_w, qkv_b = params["qkv_w"], params["qkv_b"]       # (3D, D), (3D,)
    in_w, in_b = params["in_proj_w"], params["in_proj_b"]  # (3D, D), (3D,)
    w_cols, b_cols = [], []
    for i in range(3):                                     # 0: q, 1: k, 2: v
        A = qkv_w[i * D:(i + 1) * D, :]                    # (D, D)  qkv Linear chunk
        a = qkv_b[i * D:(i + 1) * D]                       # (D,)
        W = in_w[i * D:(i + 1) * D, :]                     # (D, D)  MHA in_proj chunk
        bb = in_b[i * D:(i + 1) * D]                       # (D,)
        Wf = A.T @ W.T                                     # x @ Wf == (x @ A.T) @ W.T
        bf = a @ W.T + bb
        if i == 0:                                         # fold softmax scale into q projection
            Wf = Wf * scale
            bf = bf * scale
        w_cols.append(Wf)
        b_cols.append(bf)
    w_fold = jnp.concatenate(w_cols, axis=1).astype(jnp.bfloat16)   # (D, 3D) bf16
    b_fold = jnp.concatenate(b_cols).reshape(1, 3 * D)              # (1, 3D) f32
    wo_t = params["out_proj_w"].T.astype(jnp.bfloat16)              # (D, D)  bf16
    bo = params["out_proj_b"].reshape(1, D)                         # (1, D)  f32

    tp = min(block_proj, L)
    tq = min(block_q, L)
    tk = min(block_kv, L)
    assert L % tp == 0 and L % tq == 0 and L % tk == 0, "sequence length must tile evenly"

    # ---- Kernel A: folded projection -> q (pre-scaled), k, v in bf16 ----
    qkv_out_spec = pl.BlockSpec((1, tp, D), lambda b, p: (b, p, 0))
    q, k, v = pl.pallas_call(
        functools.partial(_proj_kernel, d_model=D),
        out_shape=(jax.ShapeDtypeStruct((B, L, D), jnp.bfloat16),) * 3,
        grid_spec=pltpu.PrefetchScalarGridSpec(
            num_scalar_prefetch=0,
            grid=(B, L // tp),
            in_specs=[
                pl.BlockSpec((1, tp, D), lambda b, p: (b, p, 0)),     # x tile
                pl.BlockSpec((D, 3 * D), lambda b, p: (0, 0)),        # folded weight (const)
                pl.BlockSpec((1, 3 * D), lambda b, p: (0, 0)),        # folded bias (const)
            ],
            out_specs=[qkv_out_spec, qkv_out_spec, qkv_out_spec],
        ),
        compiler_params=pltpu.CompilerParams(
            dimension_semantics=("parallel", "parallel"),
            vmem_limit_bytes=64 * 1024 * 1024),
    )(x, w_fold, b_fold)

    # ---- Kernel B: flash attention (online softmax over KV blocks) + fused out_proj ----
    out = pl.pallas_call(
        functools.partial(_flash_kernel, n_heads=n_heads, d_head=dh, tq=tq, tk=tk),
        out_shape=jax.ShapeDtypeStruct((B, L, D), x.dtype),
        grid_spec=pltpu.PrefetchScalarGridSpec(
            num_scalar_prefetch=0,
            grid=(B, L // tq, L // tk),
            in_specs=[
                pl.BlockSpec((1, tq, D), lambda b, qi, ki: (b, qi, 0)),   # q block
                pl.BlockSpec((1, tk, D), lambda b, qi, ki: (b, ki, 0)),   # k block
                pl.BlockSpec((1, tk, D), lambda b, qi, ki: (b, ki, 0)),   # v block
                pl.BlockSpec((D, D), lambda b, qi, ki: (0, 0)),           # out_proj W^T (const)
                pl.BlockSpec((1, D), lambda b, qi, ki: (0, 0)),           # out_proj bias (const)
            ],
            out_specs=pl.BlockSpec((1, tq, D), lambda b, qi, ki: (b, qi, 0)),
            scratch_shapes=[
                pltpu.VMEM((n_heads, tq, 1), jnp.float32),   # running max  m
                pltpu.VMEM((n_heads, tq, 1), jnp.float32),   # running sum  l
                pltpu.VMEM((tq, D), jnp.float32),            # context accumulator
            ],
        ),
        compiler_params=pltpu.CompilerParams(
            dimension_semantics=("parallel", "parallel", "arbitrary"),
            vmem_limit_bytes=64 * 1024 * 1024),
    )(q, k, v, wo_t, bo)
    return out


def _reference(x, params, n_heads):
    """Pure-JAX (f32, unfolded) reference mirroring the PyTorch module."""
    B, L, D = x.shape
    Dh = D // n_heads
    h = x @ params["qkv_w"].T + params["qkv_b"]
    q0, k0, v0 = jnp.split(h, 3, axis=-1)
    wq, wk, wv = jnp.split(params["in_proj_w"], 3, axis=0)
    bq, bk, bv = jnp.split(params["in_proj_b"], 3, axis=0)
    q = q0 @ wq.T + bq
    k = k0 @ wk.T + bk
    v = v0 @ wv.T + bv
    qh = q.reshape(B, L, n_heads, Dh).transpose(0, 2, 1, 3)
    kh = k.reshape(B, L, n_heads, Dh).transpose(0, 2, 1, 3)
    vh = v.reshape(B, L, n_heads, Dh).transpose(0, 2, 1, 3)
    s = jnp.einsum("bhld,bhmd->bhlm", qh, kh) / math.sqrt(Dh)
    mask = jnp.triu(jnp.ones((L, L), dtype=bool), k=1)
    s = jnp.where(mask[None, None], -jnp.inf, s)
    p = jax.nn.softmax(s, axis=-1)
    ctx = jnp.einsum("bhlm,bhmd->bhld", p, vh).transpose(0, 2, 1, 3).reshape(B, L, D)
    return ctx @ params["out_proj_w"].T + params["out_proj_b"]


def init_params(key, embed_dim):
    ks = jax.random.split(key, 6)
    s = 0.02
    D = embed_dim
    return {
        "qkv_w": s * jax.random.normal(ks[0], (3 * D, D), jnp.float32),
        "qkv_b": s * jax.random.normal(ks[1], (3 * D,), jnp.float32),
        "in_proj_w": s * jax.random.normal(ks[2], (3 * D, D), jnp.float32),
        "in_proj_b": s * jax.random.normal(ks[3], (3 * D,), jnp.float32),
        "out_proj_w": s * jax.random.normal(ks[4], (D, D), jnp.float32),
        "out_proj_b": s * jax.random.normal(ks[5], (D,), jnp.float32),
    }


if __name__ == "__main__":
    B, L, D, H = 2, 8, 32, 4
    key = jax.random.PRNGKey(0)
    kx, kp = jax.random.split(key)
    x = jax.random.normal(kx, (B, L, D), jnp.float32)
    params = init_params(kp, D)

    out = causal_self_attention(x, params, H)
    out = jax.block_until_ready(out)

    ref = _reference(x, params, H)
    assert out.shape == (B, L, D)
    assert jnp.max(jnp.abs(out - ref)) < 2e-3, "mismatch vs pure-JAX reference"

    print("KERNEL_OK")
</pallas_src>

<mosaic_0001>
module attributes {stable_mosaic.version = 11 : i64} {
  func.func @_proj_kernel(%arg0: i32, %arg1: i32, %arg2: memref<1x8x32xf32, #tpu.memory_space<vmem>>, %arg3: memref<32x96xbf16, #tpu.memory_space<vmem>>, %arg4: memref<1x96xf32, #tpu.memory_space<vmem>>, %arg5: memref<1x8x32xbf16, #tpu.memory_space<vmem>>, %arg6: memref<1x8x32xbf16, #tpu.memory_space<vmem>>, %arg7: memref<1x8x32xbf16, #tpu.memory_space<vmem>>) attributes {dimension_semantics = [#tpu.dimension_semantics<parallel>, #tpu.dimension_semantics<parallel>], iteration_bounds = array<i64: 2, 1>, scalar_prefetch = 0 : i64, scratch_operands = 0 : i64, tpu.core_type = #tpu.core_type<tc>, window_params = [{transform_indices = @transform_0, window_bounds = array<i64: 1, 8, 32>}, {pipeline_mode = #tpu.pipeline_mode<synchronous>, transform_indices = @transform_1, window_bounds = array<i64: 32, 96>}, {pipeline_mode = #tpu.pipeline_mode<synchronous>, transform_indices = @transform_2, window_bounds = array<i64: 1, 96>}, {transform_indices = @transform_3, window_bounds = array<i64: 1, 8, 32>}, {transform_indices = @transform_4, window_bounds = array<i64: 1, 8, 32>}, {transform_indices = @transform_5, window_bounds = array<i64: 1, 8, 32>}]} {
    %c0 = arith.constant 0 : index
    %c0_0 = arith.constant 0 : index
    %c0_1 = arith.constant 0 : index
    %0 = vector.load %arg2[%c0, %c0_0, %c0_1] : memref<1x8x32xf32, #tpu.memory_space<vmem>>, vector<1x8x32xf32>
    %1 = vector.shape_cast %0 : vector<1x8x32xf32> to vector<8x32xf32>
    %2 = arith.truncf %1 : vector<8x32xf32> to vector<8x32xbf16>
    %c0_2 = arith.constant 0 : index
    %c0_3 = arith.constant 0 : index
    %3 = vector.load %arg3[%c0_2, %c0_3] : memref<32x96xbf16, #tpu.memory_space<vmem>>, vector<32x96xbf16>
    %cst = arith.constant dense<0.000000e+00> : vector<8x96xf32>
    %4 = tpu.matmul %2, %3, %cst {dimension_numbers = #tpu.dot_dimension_numbers<[1], [0], [0], [1], [0, 0, 1, 1], [], []>} : vector<8x32xbf16>, vector<32x96xbf16>, vector<8x96xf32> -> vector<8x96xf32>
    %c0_4 = arith.constant 0 : index
    %c0_5 = arith.constant 0 : index
    %5 = vector.load %arg4[%c0_4, %c0_5] : memref<1x96xf32, #tpu.memory_space<vmem>>, vector<1x96xf32>
    %6 = vector.shape_cast %5 : vector<1x96xf32> to vector<96xf32>
    %7 = vector.shape_cast %6 : vector<96xf32> to vector<1x96xf32>
    %8 = vector.broadcast %7 : vector<1x96xf32> to vector<8x96xf32>
    %9 = arith.addf %4, %8 : vector<8x96xf32>
    %10 = arith.truncf %9 : vector<8x96xf32> to vector<8x96xbf16>
    %11 = vector.extract_strided_slice %10 {offsets = [0, 0], sizes = [8, 32], strides = [1, 1]} : vector<8x96xbf16> to vector<8x32xbf16>
    %c0_6 = arith.constant 0 : index
    %c0_7 = arith.constant 0 : index
    %c0_8 = arith.constant 0 : index
    %12 = vector.load %arg5[%c0_6, %c0_7, %c0_8] : memref<1x8x32xbf16, #tpu.memory_space<vmem>>, vector<1x8x32xbf16>
    %13 = vector.shape_cast %12 : vector<1x8x32xbf16> to vector<8x32xbf16>
    %14 = vector.shape_cast %11 : vector<8x32xbf16> to vector<1x8x32xbf16>
    tpu.vector_store %arg5[%c0_6, %c0_7, %c0_8], %14 {strides = array<i32>} : memref<1x8x32xbf16, #tpu.memory_space<vmem>>, vector<1x8x32xbf16>,
    %15 = vector.extract_strided_slice %10 {offsets = [0, 32], sizes = [8, 32], strides = [1, 1]} : vector<8x96xbf16> to vector<8x32xbf16>
    %c0_9 = arith.constant 0 : index
    %c0_10 = arith.constant 0 : index
    %c0_11 = arith.constant 0 : index
    %16 = vector.load %arg6[%c0_9, %c0_10, %c0_11] : memref<1x8x32xbf16, #tpu.memory_space<vmem>>, vector<1x8x32xbf16>
    %17 = vector.shape_cast %16 : vector<1x8x32xbf16> to vector<8x32xbf16>
    %18 = vector.shape_cast %15 : vector<8x32xbf16> to vector<1x8x32xbf16>
    tpu.vector_store %arg6[%c0_9, %c0_10, %c0_11], %18 {strides = array<i32>} : memref<1x8x32xbf16, #tpu.memory_space<vmem>>, vector<1x8x32xbf16>,
    %19 = vector.extract_strided_slice %10 {offsets = [0, 64], sizes = [8, 32], strides = [1, 1]} : vector<8x96xbf16> to vector<8x32xbf16>
    %c0_12 = arith.constant 0 : index
    %c0_13 = arith.constant 0 : index
    %c0_14 = arith.constant 0 : index
    %20 = vector.load %arg7[%c0_12, %c0_13, %c0_14] : memref<1x8x32xbf16, #tpu.memory_space<vmem>>, vector<1x8x32xbf16>
    %21 = vector.shape_cast %20 : vector<1x8x32xbf16> to vector<8x32xbf16>
    %22 = vector.shape_cast %19 : vector<8x32xbf16> to vector<1x8x32xbf16>
    tpu.vector_store %arg7[%c0_12, %c0_13, %c0_14], %22 {strides = array<i32>} : memref<1x8x32xbf16, #tpu.memory_space<vmem>>, vector<1x8x32xbf16>,
    return
  }
  func.func @transform_0(%arg0: i32, %arg1: i32) -> (i32, i32, i32) {
    %c0_i32 = arith.constant 0 : i32
    %c0_i32_0 = arith.constant 0 : i32
    return %arg0, %arg1, %c0_i32 : i32, i32, i32
  }
  func.func @transform_1(%arg0: i32, %arg1: i32) -> (i32, i32) {
    %c0_i32 = arith.constant 0 : i32
    %c0_i32_0 = arith.constant 0 : i32
    %c0_i32_1 = arith.constant 0 : i32
    return %c0_i32, %c0_i32_0 : i32, i32
  }
  func.func @transform_2(%arg0: i32, %arg1: i32) -> (i32, i32) {
    %c0_i32 = arith.constant 0 : i32
    %c0_i32_0 = arith.constant 0 : i32
    %c0_i32_1 = arith.constant 0 : i32
    return %c0_i32, %c0_i32_0 : i32, i32
  }
  func.func @transform_3(%arg0: i32, %arg1: i32) -> (i32, i32, i32) {
    %c0_i32 = arith.constant 0 : i32
    %c0_i32_0 = arith.constant 0 : i32
    return %arg0, %arg1, %c0_i32 : i32, i32, i32
  }
  func.func @transform_4(%arg0: i32, %arg1: i32) -> (i32, i32, i32) {
    %c0_i32 = arith.constant 0 : i32
    %c0_i32_0 = arith.constant 0 : i32
    return %arg0, %arg1, %c0_i32 : i32, i32, i32
  }
  func.func @transform_5(%arg0: i32, %arg1: i32) -> (i32, i32, i32) {
    %c0_i32 = arith.constant 0 : i32
    %c0_i32_0 = arith.constant 0 : i32
    return %arg0, %arg1, %c0_i32 : i32, i32, i32
  }
}

</mosaic_0001>

<llo_original>
// kernel: tpu_custom_call.1
$region0: #{tpu_custom_call.1}
  #allocation0 [shape = 'u32[]', space=smem, size = 0x4, offset = 0x4, fixed_abs, tag = 'smem constant byte address 0x4 - core index']
  #allocation1 [shape = 'u32[144,128]{1,0:T(1,128)}', space=vmem, size = 0x12000, scoped, tag = 'internal scratch']
  %s0 = inlined_call_operand.hbm [shape: f32[2,8,32], index: 0, kind: input, shape index: {}]
  %s1 = inlined_call_operand.hbm [shape: bf16[32,96], index: 1, kind: input, shape index: {}]
  %s2 = inlined_call_operand.hbm [shape: f32[1,96], index: 2, kind: input, shape index: {}]
  %s3 = inlined_call_operand.hbm [shape: bf16[2,8,32], index: 3, kind: output, shape index: {0}]
  %s4 = inlined_call_operand.hbm [shape: bf16[2,8,32], index: 4, kind: output, shape index: {1}]
  %s5 = inlined_call_operand.hbm [shape: bf16[2,8,32], index: 5, kind: output, shape index: {2}]
  %6 = xla_tuple %s3, %s4, %s5
  %s7 = sld [smem:[#allocation0]]
  $region73: #{tpu_custom_call.1} parent=0
    _
  %s9 = ssub.s32 1, %s7
  %s10 = scalar_select 0, %s9, %s7
  $region1: #{tpu_custom_call.1} parent=0
    #allocation2 [shape = 'u8[8192]{0}', space=vmem, size = 0x2000, scoped, tag = 'input window, operand 0']
    #allocation3 [shape = 's32[2]{0}', space=sflag, size = 0x8, scoped, tag = 'scoped memory for tpu_custom_call.1']
    #allocation4 [shape = 's32[2]{0}', space=sflag, size = 0x8, scoped, tag = 'scoped memory for tpu_custom_call.1']
    #allocation5 [shape = 'u8[8192]{0}', space=vmem, size = 0x2000, scoped, tag = 'input window, operand 1, single buffered']
    #allocation6 [shape = 's32[1]{0}', space=sflag, size = 0x4, scoped, tag = 'scoped memory for tpu_custom_call.1']
    #allocation7 [shape = 'u8[512]{0}', space=vmem, size = 0x400, scoped, tag = 'input window, operand 2, single buffered']
    #allocation8 [shape = 'u8[4096]{0}', space=vmem, size = 0x1000, scoped, tag = 'output window, operand 0']
    #allocation9 [shape = 'u8[4096]{0}', space=vmem, size = 0x1000, scoped, tag = 'output window, operand 1']
    #allocation10 [shape = 's32[2]{0}', space=sflag, size = 0x8, scoped, tag = 'scoped memory for tpu_custom_call.1']
    #allocation11 [shape = 'u8[4096]{0}', space=vmem, size = 0x1000, scoped, tag = 'output window, operand 2']
    %11 = vsyncpa [#allocation3], 0
    %s12 = scalar_lea.sflag [#allocation3], 1
    %13 = vsyncpa %s12, 0
    %14 = vsyncpa [#allocation6], 0
    %15 = vsyncpa [#allocation4], 0
    %s16 = scalar_lea.sflag [#allocation4], 1
    %17 = vsyncpa %s16, 0
    %18 = vsyncpa [#allocation10], 0
    %s19 = scalar_lea.sflag [#allocation10], 1
    %20 = vsyncpa %s19, 0
    loop: start=0, step=1, limit=4
    $region2: #{tpu_custom_call.1} parent=1 // loop_pre_header
      _
    $region3: #{tpu_custom_call.1} parent=1 // loop_header
      %s22 = sphi 0, %s26
      %p23 = scmp.ge.s32.totalorder %s22, 4
      %s29 = sphi 0, %s41
      %s30 = sphi 0, %s37
      %s31 = sphi 0, %s29
      %s32 = sphi 0, %s30
      %s33 = sphi 0, %s31
      %s34 = sphi 0, %s32
      %s46 = sphi 0, %s48
      %s49 = sphi 0, %s46
      %s50 = sphi 0, %s49
      %s66 = sphi 0, %s50
      %s70 = sphi 0, %s70
      %s72 = sphi 0, %s70
      %s73 = sphi 0, %s72
      %s87 = sphi 0, %s73
      %s91 = sphi 0, %s91
      %s93 = sphi 0, %s91
      %s94 = sphi 0, %s93
      %s108 = sphi 0, %s94
      %s116 = sphi 0, %s118
      %s119 = sphi 0, %s116
      %s120 = sphi 0, %s119
      %s136 = sphi 0, %s120
      %s144 = sphi 0, %s146
      %s147 = sphi 0, %s144
      %s148 = sphi 0, %s147
      %s164 = sphi 0, %s148
      %s172 = sphi 0, %s174
      %s175 = sphi 0, %s172
      %s176 = sphi 0, %s175
      %s192 = sphi 0, %s176
    $region4: #{tpu_custom_call.1} parent=1 // loop_header_branch
      %25 = sbr.rel (%p23) target = $region8
    $region5: #{tpu_custom_call.1} parent=1 // loop_body
      %s27 = ssub.s32 %s22, 1
      %s28 = ssub.s32 %s22, 2
      %s35 = sadd.s32 1, %s30
      %p36 = scmp.ge.s32.totalorder %s35, 1
      %s37 = scalar_select %p36, 0, %s35
      %s38 = sadd.s32 1, %s29
      %s39 = scalar_select %p36, %s38, %s29
      %p40 = scmp.ge.s32.totalorder %s39, 2
      %s41 = scalar_select %p40, 0, %s39
      %s42 = ssub.s32 %s29, %s41
      %s43 = ssub.s32 %s30, %s37
      %s44 = sor.u32 %s42, %s43
      %p45 = scmp.eq.s32.totalorder %s44, 0
      %s47 = sadd.s32 %s46, 1
      %s48 = scalar_select %p45, %s46, %s47
      %p51 = pneg %p45
      %p52 = scmp.eq.s32.totalorder %s22, 1
      %p53 = por %p51, %p52
      %p54 = scmp.ne.s32.totalorder %s46, %s49
      %p55 = scmp.eq.s32.totalorder %s22, 0
      %p56 = por %p54, %p55
      %p57 = scmp.ne.s32.totalorder %s46, %s49
      %p58 = scmp.eq.s32.totalorder %s27, 1
      %p59 = por %p57, %p58
      %p60 = scmp.ne.s32.totalorder %s49, %s50
      %p61 = scmp.eq.s32.totalorder %s27, 0
      %p62 = por %p60, %p61
      %p63 = scmp.ne.s32.totalorder %s49, %s50
      %p64 = scmp.eq.s32.totalorder %s28, 1
      %p65 = por %p63, %p64
      %p67 = scmp.ne.s32.totalorder %s50, %s66
      %p68 = scmp.eq.s32.totalorder %s28, 0
      %p69 = por %p67, %p68
      %s71 = sadd.s32 %s70, 1
      %p74 = scmp.eq.s32.totalorder %s22, 1
      %p75 = scmp.ne.s32.totalorder %s70, %s72
      %p76 = scmp.eq.s32.totalorder %s22, 0
      %p77 = por %p75, %p76
      %p78 = scmp.ne.s32.totalorder %s70, %s72
      %p79 = scmp.eq.s32.totalorder %s27, 1
      %p80 = por %p78, %p79
      %p81 = scmp.ne.s32.totalorder %s72, %s73
      %p82 = scmp.eq.s32.totalorder %s27, 0
      %p83 = por %p81, %p82
      %p84 = scmp.ne.s32.totalorder %s72, %s73
      %p85 = scmp.eq.s32.totalorder %s28, 1
      %p86 = por %p84, %p85
      %p88 = scmp.ne.s32.totalorder %s73, %s87
      %p89 = scmp.eq.s32.totalorder %s28, 0
      %p90 = por %p88, %p89
      %s92 = sadd.s32 %s91, 1
      %p95 = scmp.eq.s32.totalorder %s22, 1
      %p96 = scmp.ne.s32.totalorder %s91, %s93
      %p97 = scmp.eq.s32.totalorder %s22, 0
      %p98 = por %p96, %p97
      %p99 = scmp.ne.s32.totalorder %s91, %s93
      %p100 = scmp.eq.s32.totalorder %s27, 1
      %p101 = por %p99, %p100
      %p102 = scmp.ne.s32.totalorder %s93, %s94
      %p103 = scmp.eq.s32.totalorder %s27, 0
      %p104 = por %p102, %p103
      %p105 = scmp.ne.s32.totalorder %s93, %s94
      %p106 = scmp.eq.s32.totalorder %s28, 1
      %p107 = por %p105, %p106
      %p109 = scmp.ne.s32.totalorder %s94, %s108
      %p110 = scmp.eq.s32.totalorder %s28, 0
      %p111 = por %p109, %p110
      %s112 = ssub.s32 %s29, %s41
      %s113 = ssub.s32 %s30, %s37
      %s114 = sor.u32 %s112, %s113
      %p115 = scmp.eq.s32.totalorder %s114, 0
      %s117 = sadd.s32 %s116, 1
      %s118 = scalar_select %p115, %s116, %s117
      %p121 = pneg %p115
      %p122 = scmp.eq.s32.totalorder %s22, 1
      %p123 = por %p121, %p122
      %p124 = scmp.ne.s32.totalorder %s116, %s119
      %p125 = scmp.eq.s32.totalorder %s22, 0
      %p126 = por %p124, %p125
      %p127 = scmp.ne.s32.totalorder %s116, %s119
      %p128 = scmp.eq.s32.totalorder %s27, 1
      %p129 = por %p127, %p128
      %p130 = scmp.ne.s32.totalorder %s119, %s120
      %p131 = scmp.eq.s32.totalorder %s27, 0
      %p132 = por %p130, %p131
      %p133 = scmp.ne.s32.totalorder %s119, %s120
      %p134 = scmp.eq.s32.totalorder %s28, 1
      %p135 = por %p133, %p134
      %p137 = scmp.ne.s32.totalorder %s120, %s136
      %p138 = scmp.eq.s32.totalorder %s28, 0
      %p139 = por %p137, %p138
      %s140 = ssub.s32 %s29, %s41
      %s141 = ssub.s32 %s30, %s37
      %s142 = sor.u32 %s140, %s141
      %p143 = scmp.eq.s32.totalorder %s142, 0
      %s145 = sadd.s32 %s144, 1
      %s146 = scalar_select %p143, %s144, %s145
      %p149 = pneg %p143
      %p150 = scmp.eq.s32.totalorder %s22, 1
      %p151 = por %p149, %p150
      %p152 = scmp.ne.s32.totalorder %s144, %s147
      %p153 = scmp.eq.s32.totalorder %s22, 0
      %p154 = por %p152, %p153
      %p155 = scmp.ne.s32.totalorder %s144, %s147
      %p156 = scmp.eq.s32.totalorder %s27, 1
      %p157 = por %p155, %p156
      %p158 = scmp.ne.s32.totalorder %s147, %s148
      %p159 = scmp.eq.s32.totalorder %s27, 0
      %p160 = por %p158, %p159
      %p161 = scmp.ne.s32.totalorder %s147, %s148
      %p162 = scmp.eq.s32.totalorder %s28, 1
      %p163 = por %p161, %p162
      %p165 = scmp.ne.s32.totalorder %s148, %s164
      %p166 = scmp.eq.s32.totalorder %s28, 0
      %p167 = por %p165, %p166
      %s168 = ssub.s32 %s29, %s41
      %s169 = ssub.s32 %s30, %s37
      %s170 = sor.u32 %s168, %s169
      %p171 = scmp.eq.s32.totalorder %s170, 0
      %s173 = sadd.s32 %s172, 1
      %s174 = scalar_select %p171, %s172, %s173
      %p177 = pneg %p171
      %p178 = scmp.eq.s32.totalorder %s22, 1
      %p179 = por %p177, %p178
      %p180 = scmp.ne.s32.totalorder %s172, %s175
      %p181 = scmp.eq.s32.totalorder %s22, 0
      %p182 = por %p180, %p181
      %p183 = scmp.ne.s32.totalorder %s172, %s175
      %p184 = scmp.eq.s32.totalorder %s27, 1
      %p185 = por %p183, %p184
      %p186 = scmp.ne.s32.totalorder %s175, %s176
      %p187 = scmp.eq.s32.totalorder %s27, 0
      %p188 = por %p186, %p187
      %p189 = scmp.ne.s32.totalorder %s175, %s176
      %p190 = scmp.eq.s32.totalorder %s28, 1
      %p191 = por %p189, %p190
      %p193 = scmp.ne.s32.totalorder %s176, %s192
      %p194 = scmp.eq.s32.totalorder %s28, 0
      %p195 = por %p193, %p194
      %p196 = scmp.le.s32.totalorder 1, %s22
      %p197 = scmp.lt.s32.totalorder %s22, 3
      %p198 = pnand %p196, %p197
      %p199 = pneg %p198
      // Predicated region
      $region9: #{tpu_custom_call.1} parent=5 // pred_check
        _
      $region10: #{tpu_custom_call.1} parent=5 // pred_check_branch
        %201 = sbr.rel (%p198) target = $region12
      $region11: #{tpu_custom_call.1} parent=5 // pred_region
        %s202 = ssub.s32 %s22, 1
        // Predicated region
        $region13: #{tpu_custom_call.1} parent=11 // pred_check
          %p203 = pneg %p83
        $region14: #{tpu_custom_call.1} parent=11 // pred_check_branch
          %205 = sbr.rel (%p203) target = $region16
        $region15: #{tpu_custom_call.1} parent=11 // pred_region
          %s207 = ssub.s32 256, 256
          %208 = vsyncadd [#allocation6], %s207
          %s209 = sshll.u32 [#allocation5], 4
          %s210 = int_to_ptr.vmem [resolvable:$true] %s209
          %215 = dma.hbm_to_vmem [thread:$0]  %s1, 256, %s210, [#allocation6], 64, 64, 4
        $region16: #{tpu_custom_call.1} parent=11 // pred_fallthru
          _
        // Predicated region
        $region17: #{tpu_custom_call.1} parent=11 // pred_check
          %p216 = pneg %p104
        $region18: #{tpu_custom_call.1} parent=11 // pred_check_branch
          %218 = sbr.rel (%p216) target = $region20
        $region19: #{tpu_custom_call.1} parent=11 // pred_region
          %s220 = ssub.s32 16, 16
          %221 = vsyncadd [#allocation6], %s220
          %s223 = sshll.u32 [#allocation7], 4
          %s224 = int_to_ptr.vmem [resolvable:$true] %s223
          %226 = dma.hbm_to_vmem [thread:$0]  %s2, 16, %s224, [#allocation6]
        $region20: #{tpu_custom_call.1} parent=11 // pred_fallthru
          _
      $region12: #{tpu_custom_call.1} parent=5 // pred_fallthru
        _
      %p227 = scmp.lt.s32.totalorder %s22, 2
      // Predicated region
      $region21: #{tpu_custom_call.1} parent=5 // pred_check
        %p228 = pneg %p227
      $region22: #{tpu_custom_call.1} parent=5 // pred_check_branch
        %230 = sbr.rel (%p228) target = $region24
      $region23: #{tpu_custom_call.1} parent=5 // pred_region
        // Predicated region
        $region25: #{tpu_custom_call.1} parent=23 // pred_check
          %p231 = pneg %p56
        $region26: #{tpu_custom_call.1} parent=23 // pred_check_branch
          %233 = sbr.rel (%p231) target = $region28
        $region27: #{tpu_custom_call.1} parent=23 // pred_region
          %s234 = sand.u32 %s46, 1
          %s235 = scalar_lea.sflag [#allocation3], %s234
          %s236 = sand.u32 %s46, 1
          %s237 = smul.addr %s236, 8
          %s238 = scalar_lea.vmem [#allocation2], %s237
          %s240 = ssub.s32 128, 128
          %241 = vsyncadd %s235, %s240
          %s242 = sadd.s32 %s30, %s29
          %s243 = smul.addr %s242, 128
          %s244 = scalar_lea.hbm %s0, %s243
          %s246 = sshll.u32 %s238, 4
          %s247 = int_to_ptr.vmem [resolvable:$true] %s246
          %249 = dma.hbm_to_vmem [thread:$0]  %s244, 128, %s247, %s235
        $region28: #{tpu_custom_call.1} parent=23 // pred_fallthru
          _
      $region24: #{tpu_custom_call.1} parent=5 // pred_fallthru
        _
      %p250 = scmp.le.s32.totalorder 1, %s22
      %p251 = scmp.lt.s32.totalorder %s22, 3
      %p252 = pnand %p250, %p251
      %p253 = pneg %p252
      // Predicated region
      $region29: #{tpu_custom_call.1} parent=5 // pred_check
        _
      $region30: #{tpu_custom_call.1} parent=5 // pred_check_branch
        %255 = sbr.rel (%p252) target = $region32
      $region31: #{tpu_custom_call.1} parent=5 // pred_region
        %s256 = ssub.s32 %s22, 1
        %s257 = sand.u32 %s49, 1
        %s258 = scalar_lea.sflag [#allocation3], %s257
        %s259 = sand.u32 %s49, 1
        %s260 = smul.addr %s259, 8
        %s261 = scalar_lea.vmem [#allocation2], %s260
        // Predicated region
        $region33: #{tpu_custom_call.1} parent=31 // pred_check
          %p262 = pneg %p62
        $region34: #{tpu_custom_call.1} parent=31 // pred_check_branch
          %264 = sbr.rel (%p262) target = $region36
        $region35: #{tpu_custom_call.1} parent=31 // pred_region
          %265 = dma.done %s258, 128
        $region36: #{tpu_custom_call.1} parent=31 // pred_fallthru
          _
        // Predicated region
        $region37: #{tpu_custom_call.1} parent=31 // pred_check
          %p266 = pneg %p83
        $region38: #{tpu_custom_call.1} parent=31 // pred_check_branch
          %268 = sbr.rel (%p266) target = $region40
        $region39: #{tpu_custom_call.1} parent=31 // pred_region
          %269 = dma.done [#allocation6], 256
        $region40: #{tpu_custom_call.1} parent=31 // pred_fallthru
          _
        // Predicated region
        $region41: #{tpu_custom_call.1} parent=31 // pred_check
          %p270 = pneg %p104
        $region42: #{tpu_custom_call.1} parent=31 // pred_check_branch
          %272 = sbr.rel (%p270) target = $region44
        $region43: #{tpu_custom_call.1} parent=31 // pred_region
          %273 = dma.done [#allocation6], 16
        $region44: #{tpu_custom_call.1} parent=31 // pred_fallthru
          _
        %s274 = sand.u32 %s49, 1
        %s275 = scalar_lea.sflag [#allocation3], %s274
        %s276 = sand.u32 %s49, 1
        %s277 = smul.addr %s276, 8
        %s278 = scalar_lea.vmem [#allocation2], %s277
        %p279 = pneg %p62
        %p280 = pneg %p59
        %p281 = pneg %p83
        %p282 = pneg %p80
        %p283 = pneg %p104
        %p284 = pneg %p101
        %p285 = pneg %p132
        %p286 = pneg %p129
        %s287 = sand.u32 %s119, 1
        %s288 = scalar_lea.sflag [#allocation4], %s287
        %s289 = sand.u32 %s119, 1
        %s290 = smul.addr %s289, 4
        %s291 = scalar_lea.vmem [#allocation8], %s290
        %p292 = pneg %p160
        %p293 = pneg %p157
        %s294 = sand.u32 %s27, 1
        %s295 = scalar_lea.sflag [#allocation10], %s294
        %s296 = sand.u32 %s147, 1
        %s297 = smul.addr %s296, 4
        %s298 = scalar_lea.vmem [#allocation9], %s297
        %p299 = pneg %p188
        %p300 = pneg %p185
        %s301 = sand.u32 %s27, 1
        %s302 = scalar_lea.sflag [#allocation10], %s301
        %s303 = sand.u32 %s175, 1
        %s304 = smul.addr %s303, 4
        %s305 = scalar_lea.vmem [#allocation11], %s304
        %v307 = vld [vmem:[%s261] sm:$0xff]
        %v308 = vpack.c.bf16 %v307, %v307
        %v309 = vld [vmem:[#allocation5] sm:$0xf]
        %v310 = vld [vmem:[#allocation5 + $0x4] sm:$0xf]
        %v311 = vld [vmem:[#allocation5 + $0x8] sm:$0xf]
        %v312 = vld [vmem:[#allocation5 + $0xc] sm:$0xf]
        %v313 = vld [vmem:[#allocation7] sm:$0x1]
        %v315 = vlaneseq
        %v316 = vshrl.u32 %v315, 7
        %v317 = vsub.s32 0, %v316
        %v318 = vrot.slane %v313, %v317
        %v324 = vunpack.c.l.b16 %v309
        %v325 = vunpack.c.l.b16 %v310
        %v326 = vunpack.c.l.b16 %v311
        %v327 = vunpack.c.l.b16 %v312
        %v328 = vpack.c.b16 %v325, %v324
        %v329 = vpack.c.b16 %v327, %v326
        %vm332 = vcmask 261120
        %v334 = vsel %vm332, %v308, 0
        %336 = vmatprep.subr.bf16.mxu0 0
        %337 = vmatpush1.bf16.msra.mxu0 %v328
        %338 = vmatprep.subr.bf16.mxu0 0
        %339 = vmatpush1.bf16.msra.mxu0 %v329
        %340 = vmatprep.subr.bf16.mxu0 0
        %341 = vmatpush1.bf16.msra.mxu0 0
        %342 = vmatprep.subr.bf16.mxu0 0
        %343 = vmatpush1.bf16.msra.mxu0 0
        %344 = vmatprep.subr.bf16.mxu0 0
        %345 = vmatpush1.bf16.msra.mxu0 0
        %346 = vmatprep.subr.bf16.mxu0 0
        %347 = vmatpush1.bf16.msra.mxu0 0
        %348 = vmatprep.subr.bf16.mxu0 0
        %349 = vmatpush1.bf16.msra.mxu0 0
        %350 = vmatprep.subr.bf16.mxu0 0
        %351 = vmatpush1.bf16.msra.mxu0 0
        %352 = vmatprep.subr.bf16.mxu0 0
        %353 = vmatpush1.bf16.msra.mxu0 0
        %354 = vmatprep.subr.bf16.mxu0 0
        %355 = vmatpush1.bf16.msra.mxu0 0
        %356 = vmatprep.subr.bf16.mxu0 0
        %357 = vmatpush1.bf16.msra.mxu0 0
        %358 = vmatprep.subr.bf16.mxu0 0
        %359 = vmatpush1.bf16.msra.mxu0 0
        %360 = vmatprep.subr.bf16.mxu0 0
        %361 = vmatpush1.bf16.msra.mxu0 0
        %362 = vmatprep.subr.bf16.mxu0 0
        %363 = vmatpush1.bf16.msra.mxu0 0
        %364 = vmatprep.subr.bf16.mxu0 0
        %365 = vmatpush1.bf16.msra.mxu0 0
        %366 = vmatprep.subr.bf16.mxu0 0
        %367 = vmatpush1.bf16.msra.mxu0 0
        %368 = vmatprep.mubr.bf16.mxu0 0
        %369 = vmatmul.mubr.bf16.gmra.mrb[0].mxu0 %v334
        %v370 = vpop.f32.mrb[0].mxu0
        %v371 = vadd.f32 %v318, %v370
        %v372 = vpop.f32.mrb[0].mxu0
        %v373 = vpop.f32.mrb[0].mxu0
        %v374 = vpop.f32.mrb[0].mxu0
        %375 = vdwg.mxu0
        %v376 = vpack.c.bf16 %v371, %v371
        %vm377 = vcmask 257024
        %378 = vst.msk [vmem:[%s291] sm:$0xf] %vm377, %v376
        %v380 = vunpack.c.l.b16 %v376
        %v381 = vpack.c.b16 %v380, %v380
        %382 = vrot.lane.b32.xlu0 %v381, 96
        %v383 = vpop.permute.xlu0 %382
        %385 = vst.msk [vmem:[%s298] sm:$0xf] %vm377, %v383
        %386 = vrot.lane.b32.xlu0 %v381, 64
        %v387 = vpop.permute.xlu0 %386
        %389 = vst.msk [vmem:[%s305] sm:$0xf] %vm377, %v387
        %s390 = sand.u32 %s119, 1
        %s391 = scalar_lea.sflag [#allocation4], %s390
        %s392 = sand.u32 %s119, 1
        %s393 = smul.addr %s392, 4
        %s394 = scalar_lea.vmem [#allocation8], %s393
        %s395 = sand.u32 %s27, 1
        %s396 = scalar_lea.sflag [#allocation10], %s395
        %s397 = sand.u32 %s147, 1
        %s398 = smul.addr %s397, 4
        %s399 = scalar_lea.vmem [#allocation9], %s398
        %s400 = sand.u32 %s27, 1
        %s401 = scalar_lea.sflag [#allocation10], %s400
        %s402 = sand.u32 %s175, 1
        %s403 = smul.addr %s402, 4
        %s404 = scalar_lea.vmem [#allocation11], %s403
        // Predicated region
        $region45: #{tpu_custom_call.1} parent=31 // pred_check
          %p405 = pneg %p129
        $region46: #{tpu_custom_call.1} parent=31 // pred_check_branch
          %407 = sbr.rel (%p405) target = $region48
        $region47: #{tpu_custom_call.1} parent=31 // pred_region
          %s409 = ssub.s32 64, 64
          %410 = vsyncadd %s391, %s409
          %s411 = sadd.s32 %s32, %s31
          %s412 = smul.addr %s411, 64
          %s413 = scalar_lea.hbm %s3, %s412
          %s415 = sshll.u32 %s394, 4
          %s416 = int_to_ptr.vmem [resolvable:$true] %s415
          %418 = dma.vmem_to_hbm [thread:$0]  %s416, 64, %s413, %s391
        $region48: #{tpu_custom_call.1} parent=31 // pred_fallthru
          _
        // Predicated region
        $region49: #{tpu_custom_call.1} parent=31 // pred_check
          %p419 = pneg %p157
        $region50: #{tpu_custom_call.1} parent=31 // pred_check_branch
          %421 = sbr.rel (%p419) target = $region52
        $region51: #{tpu_custom_call.1} parent=31 // pred_region
          %s423 = ssub.s32 64, 64
          %424 = vsyncadd %s396, %s423
          %s425 = sadd.s32 %s32, %s31
          %s426 = smul.addr %s425, 64
          %s427 = scalar_lea.hbm %s4, %s426
          %s429 = sshll.u32 %s399, 4
          %s430 = int_to_ptr.vmem [resolvable:$true] %s429
          %432 = dma.vmem_to_hbm [thread:$0]  %s430, 64, %s427, %s396
        $region52: #{tpu_custom_call.1} parent=31 // pred_fallthru
          _
        // Predicated region
        $region53: #{tpu_custom_call.1} parent=31 // pred_check
          %p433 = pneg %p185
        $region54: #{tpu_custom_call.1} parent=31 // pred_check_branch
          %435 = sbr.rel (%p433) target = $region56
        $region55: #{tpu_custom_call.1} parent=31 // pred_region
          %s437 = ssub.s32 64, 64
          %438 = vsyncadd %s401, %s437
          %s439 = sadd.s32 %s32, %s31
          %s440 = smul.addr %s439, 64
          %s441 = scalar_lea.hbm %s5, %s440
          %s443 = sshll.u32 %s404, 4
          %s444 = int_to_ptr.vmem [resolvable:$true] %s443
          %446 = dma.vmem_to_hbm [thread:$0]  %s444, 64, %s441, %s401
        $region56: #{tpu_custom_call.1} parent=31 // pred_fallthru
          _
      $region32: #{tpu_custom_call.1} parent=5 // pred_fallthru
        _
      %p447 = scmp.le.s32.totalorder 2, %s22
      // Predicated region
      $region57: #{tpu_custom_call.1} parent=5 // pred_check
        %p448 = pneg %p447
      $region58: #{tpu_custom_call.1} parent=5 // pred_check_branch
        %450 = sbr.rel (%p448) target = $region60
      $region59: #{tpu_custom_call.1} parent=5 // pred_region
        %s451 = ssub.s32 %s22, 2
        // Predicated region
        $region61: #{tpu_custom_call.1} parent=59 // pred_check
          %p452 = pneg %p135
        $region62: #{tpu_custom_call.1} parent=59 // pred_check_branch
          %454 = sbr.rel (%p452) target = $region64
        $region63: #{tpu_custom_call.1} parent=59 // pred_region
          %s455 = sand.u32 %s120, 1
          %s456 = scalar_lea.sflag [#allocation4], %s455
          %s457 = sand.u32 %s120, 1
          %s458 = smul.addr %s457, 4
          %s459 = scalar_lea.vmem [#allocation8], %s458
          %460 = dma.done %s456, 64
        $region64: #{tpu_custom_call.1} parent=59 // pred_fallthru
          _
        // Predicated region
        $region65: #{tpu_custom_call.1} parent=59 // pred_check
          %p461 = pneg %p163
        $region66: #{tpu_custom_call.1} parent=59 // pred_check_branch
          %463 = sbr.rel (%p461) target = $region68
        $region67: #{tpu_custom_call.1} parent=59 // pred_region
          %s464 = sand.u32 %s28, 1
          %s465 = scalar_lea.sflag [#allocation10], %s464
          %s466 = sand.u32 %s148, 1
          %s467 = smul.addr %s466, 4
          %s468 = scalar_lea.vmem [#allocation9], %s467
          %469 = dma.done %s465, 64
        $region68: #{tpu_custom_call.1} parent=59 // pred_fallthru
          _
        // Predicated region
        $region69: #{tpu_custom_call.1} parent=59 // pred_check
          %p470 = pneg %p191
        $region70: #{tpu_custom_call.1} parent=59 // pred_check_branch
          %472 = sbr.rel (%p470) target = $region72
        $region71: #{tpu_custom_call.1} parent=59 // pred_region
          %s473 = sand.u32 %s28, 1
          %s474 = scalar_lea.sflag [#allocation10], %s473
          %s475 = sand.u32 %s176, 1
          %s476 = smul.addr %s475, 4
          %s477 = scalar_lea.vmem [#allocation11], %s476
          %478 = dma.done %s474, 64
        $region72: #{tpu_custom_call.1} parent=59 // pred_fallthru
          _
      $region60: #{tpu_custom_call.1} parent=5 // pred_fallthru
        _
    $region6: #{tpu_custom_call.1} parent=1 // loop_footer
      %s26 = sadd.s32 1, %s22
    $region7: #{tpu_custom_call.1} parent=1 // loop_footer_branch
      %21 = sbr.rel target = $region3
    $region8: #{tpu_custom_call.1} parent=1 // loop_exit
      _
    %479 = vsyncpa [#allocation3], 1
    %s480 = scalar_lea.sflag [#allocation3], 1
    %481 = vsyncpa %s480, 1
    %482 = vsyncpa [#allocation6], 1
    %483 = vsyncpa [#allocation4], 1
    %s484 = scalar_lea.sflag [#allocation4], 1
    %485 = vsyncpa %s484, 1
    %486 = vsyncpa [#allocation10], 1
    %s487 = scalar_lea.sflag [#allocation10], 1
    %488 = vsyncpa %s487, 1

</llo_original>
